<compile_context>
chip_gen: v5e
topology: v5e:2x2
jax: 0.10.0
libtpu: 0.0.40
codegen_flags: <defaults>
</compile_context>

<pallas_src>
import functools

import jax
import jax.numpy as jnp
from jax import lax
from jax.experimental import pallas as pl
from jax.experimental.pallas import tpu as pltpu

NORM_EPS = 1e-12  # torch.nn.functional.normalize default eps (clamp-min on the L2 norm)


def _eaa_kernel(x_ref, wqk_ref, rows_ref, wstk_ref, o_ref):
    # x_ref:    (Btile, N, C)
    # wqk_ref:  (C, 2D)      fused [Wq | Wk]
    # rows_ref: (8, 2D)      row 0 = [bq | bk], row 1 = [w_g*scale | 0], row 2 = [bpf | 0]
    # wstk_ref: (2, D, D)    [Wp @ Wf, Wf]
    # o_ref:    (Btile, N, D)
    bt, n, c = x_ref.shape
    d = wstk_ref.shape[-1]
    eps2 = NORM_EPS * NORM_EPS

    # Leading-dim merge (layout-preserving): treat the Btile batches as one big M.
    x2 = x_ref[...].reshape(bt * n, c)                                   # (M, C)

    # Fused to_query/to_key projection on the MXU (f32 accumulate), 128-lane result.
    qk = jnp.dot(x2, wqk_ref[...], preferred_element_type=jnp.float32)
    qk = qk + rows_ref[0:1, :]                                           # + [bq | bk]
    q = qk[:, :d]                                                        # (M, D)
    k = qk[:, d:]                                                        # (M, D)

    # F.normalize(dim=-1): v * rsqrt(max(sum v^2, eps^2))  (== v / max(||v||, eps))
    q = q * lax.rsqrt(jnp.maximum(jnp.sum(q * q, axis=-1, keepdims=True), eps2))
    k = k * lax.rsqrt(jnp.maximum(jnp.sum(k * k, axis=-1, keepdims=True), eps2))

    # A = F.normalize((q @ w_g) * scale, dim=1); scale is folded into w_g row.
    wg = rows_ref[1:2, :d]                                               # (1, D)
    qw = jnp.sum(q * wg, axis=-1, keepdims=True)                         # (M, 1)
    qw3 = qw.reshape(bt, n, 1)                                           # per-batch view
    a = qw3 * lax.rsqrt(jnp.maximum(jnp.sum(qw3 * qw3, axis=1, keepdims=True), eps2))

    # Global context G = sum_n A_n * q_n  -> (Btile, 1, D), then G*k.
    q3 = q.reshape(bt, n, d)
    k3 = k.reshape(bt, n, d)
    g = jnp.sum(a * q3, axis=1, keepdims=True)                           # (Btile, 1, D)
    gk = (g * k3).reshape(bt * n, d)                                     # (M, D)

    # out = final(Proj(G*k) + q) = (G*k) @ (Wp@Wf) + q @ Wf + (bp@Wf + bf)
    # (two independent MXU matmuls instead of a dependent chain)
    wpf = wstk_ref[0]
    wf = wstk_ref[1]
    bpf = rows_ref[2:3, :d]
    out = (jnp.dot(gk, wpf, preferred_element_type=jnp.float32)
           + jnp.dot(q, wf, preferred_element_type=jnp.float32)
           + bpf)
    o_ref[...] = out.reshape(bt, n, d).astype(o_ref.dtype)


def _choose_btile(B, N, C, D):
    """Largest divisor of B that (a) fits a conservative VMEM budget and
    (b) stops growing once the matmul M-dim reaches ~256 rows."""
    target_rows = 256
    bytes_per_batch = 4 * N * (C + 8 * D)          # rough f32 working set / batch elem
    vmem_cap = max(1, (24 << 20) // max(bytes_per_batch, 1))
    best = 1
    for t in range(1, B + 1):
        if B % t:
            continue
        if t > vmem_cap:
            break
        best = t
        if t * N >= target_rows:
            break
    return best


@functools.partial(jax.jit, static_argnames=("token_dim",))
def efficient_additive_attention(x, wq, bq, wk, bk, w_g, wp, bp, wf, bf, *, token_dim):
    """x: (B, C, H, W) f32.  Linear weights given as (in, out); biases (out,); w_g: (D, 1)."""
    B, C, H, W = x.shape
    N = H * W
    D = wq.shape[1]
    scale = float(token_dim) ** -0.5

    # NCHW -> (B, N, C) sequence layout (matches permute(0,2,3,1).reshape).
    # TODO(synk): these two wrapper transposes (and the final one) are full HBM
    # round-trips in XLA; fuse into producer/consumer or use an NCHW-native variant
    # when this kernel is embedded in a real network.
    x_seq = jnp.transpose(x, (0, 2, 3, 1)).reshape(B, N, C)

    # Fused / prefolded weights (tiny one-time XLA ops at the call site).
    wqk = jnp.concatenate([wq, wk], axis=1)                  # (C, 2D)
    wpf = wp @ wf                                            # (D, D)
    bpf = bp @ wf + bf                                       # (D,)
    rows = jnp.zeros((8, 2 * D), jnp.float32)
    rows = rows.at[0, :D].set(bq).at[0, D:].set(bk)          # fused q/k bias
    rows = rows.at[1, :D].set(w_g.reshape(D) * scale)        # w_g row (scale folded in)
    rows = rows.at[2, :D].set(bpf)                           # prefolded output bias
    wstk = jnp.stack([wpf, wf], axis=0)                      # (2, D, D)

    btile = _choose_btile(B, N, C, D)
    grid = (B // btile,)

    def resident(shape):
        # Constant index map: block never changes across grid steps -> stays in VMEM.
        return pl.BlockSpec(shape, lambda i: (0,) * len(shape))

    out = pl.pallas_call(
        _eaa_kernel,
        out_shape=jax.ShapeDtypeStruct((B, N, D), jnp.float32),
        grid=grid,
        in_specs=[
            pl.BlockSpec((btile, N, C), lambda i: (i, 0, 0)),   # x, Btile batches per step
            resident((C, 2 * D)),                               # fused Wq|Wk
            resident((8, 2 * D)),                               # bias / w_g rows
            resident((2, D, D)),                                # [Wp@Wf, Wf]
        ],
        out_specs=pl.BlockSpec((btile, N, D), lambda i: (i, 0, 0)),
        compiler_params=pltpu.CompilerParams(
            dimension_semantics=("parallel",),                  # megacore-shard batches (v7x)
            vmem_limit_bytes=32 << 20,                          # safe on v5e/v6e/v7x
        ),
    )(x_seq, wqk, rows, wstk)

    # (B, N, D) -> (B, H, W, D) -> (B, D, H, W)   (matches reshape + permute(0,3,1,2))
    return out.reshape(B, H, W, D).transpose(0, 3, 1, 2)


def _reference(x, wq, bq, wk, bk, w_g, wp, bp, wf, bf, *, token_dim):
    """Pure-JAX reference mirroring the PyTorch forward exactly (no prefolds)."""
    B, C, H, W = x.shape
    N = H * W
    xs = jnp.transpose(x, (0, 2, 3, 1)).reshape(B, N, C)

    def l2norm(v, axis):
        return v / jnp.maximum(jnp.linalg.norm(v, axis=axis, keepdims=True), NORM_EPS)

    q = l2norm(xs @ wq + bq, -1)
    k = l2norm(xs @ wk + bk, -1)
    a = l2norm((q @ w_g) * (token_dim ** -0.5), 1)       # normalize over sequence dim
    g = jnp.sum(a * q, axis=1, keepdims=True)            # (B, 1, D)
    out = (g * k) @ wp + bp + q
    out = out @ wf + bf
    D = out.shape[-1]
    return out.reshape(B, H, W, D).transpose(0, 3, 1, 2)


if __name__ == "__main__":
    # Module defaults: in_dims=64, token_dim=32, num_heads=2 -> D = 64 = C
    # (the final NCHW reshape requires token_dim*num_heads == in_dims).
    in_dims, token_dim, num_heads = 64, 32, 2
    D = token_dim * num_heads
    B, H, W = 2, 8, 8

    key = jax.random.PRNGKey(0)
    keys = jax.random.split(key, 10)
    x = jax.random.normal(keys[0], (B, in_dims, H, W), dtype=jnp.float32)
    wq = 0.1 * jax.random.normal(keys[1], (in_dims, D), dtype=jnp.float32)
    bq = 0.1 * jax.random.normal(keys[2], (D,), dtype=jnp.float32)
    wk = 0.1 * jax.random.normal(keys[3], (in_dims, D), dtype=jnp.float32)
    bk = 0.1 * jax.random.normal(keys[4], (D,), dtype=jnp.float32)
    w_g = jax.random.normal(keys[5], (D, 1), dtype=jnp.float32)
    wp = 0.1 * jax.random.normal(keys[6], (D, D), dtype=jnp.float32)
    bp = 0.1 * jax.random.normal(keys[7], (D,), dtype=jnp.float32)
    wf = 0.1 * jax.random.normal(keys[8], (D, D), dtype=jnp.float32)
    bf = 0.1 * jax.random.normal(keys[9], (D,), dtype=jnp.float32)

    out = efficient_additive_attention(x, wq, bq, wk, bk, w_g, wp, bp, wf, bf,
                                       token_dim=token_dim)
    out = jax.block_until_ready(out)

    ref = _reference(x, wq, bq, wk, bk, w_g, wp, bp, wf, bf, token_dim=token_dim)
    assert out.shape == (B, D, H, W)
    # Slightly loosened vs pure-f32: Proj/final prefold reassociates one matmul chain.
    assert jnp.allclose(out, ref, atol=2e-4, rtol=2e-4), "mismatch vs reference"

    print("KERNEL_OK")
</pallas_src>

<mosaic_0001>
module attributes {stable_mosaic.version = 11 : i64} {
  func.func @_eaa_kernel(%arg0: i32, %arg1: memref<2x64x64xf32, #tpu.memory_space<vmem>>, %arg2: memref<64x128xf32, #tpu.memory_space<vmem>>, %arg3: memref<8x128xf32, #tpu.memory_space<vmem>>, %arg4: memref<2x64x64xf32, #tpu.memory_space<vmem>>, %arg5: memref<2x64x64xf32, #tpu.memory_space<vmem>>) attributes {dimension_semantics = [#tpu.dimension_semantics<parallel>], iteration_bounds = array<i64: 1>, scalar_prefetch = 0 : i64, scratch_operands = 0 : i64, tpu.core_type = #tpu.core_type<tc>, window_params = [{transform_indices = @transform_0, window_bounds = array<i64: 2, 64, 64>}, {pipeline_mode = #tpu.pipeline_mode<synchronous>, transform_indices = @transform_1, window_bounds = array<i64: 64, 128>}, {pipeline_mode = #tpu.pipeline_mode<synchronous>, transform_indices = @transform_2, window_bounds = array<i64: 8, 128>}, {pipeline_mode = #tpu.pipeline_mode<synchronous>, transform_indices = @transform_3, window_bounds = array<i64: 2, 64, 64>}, {transform_indices = @transform_4, window_bounds = array<i64: 2, 64, 64>}]} {
    %c0 = arith.constant 0 : index
    %c0_0 = arith.constant 0 : index
    %c0_1 = arith.constant 0 : index
    %0 = vector.load %arg1[%c0, %c0_0, %c0_1] : memref<2x64x64xf32, #tpu.memory_space<vmem>>, vector<2x64x64xf32>
    %1 = vector.shape_cast %0 : vector<2x64x64xf32> to vector<128x64xf32>
    %c0_2 = arith.constant 0 : index
    %c0_3 = arith.constant 0 : index
    %2 = vector.load %arg2[%c0_2, %c0_3] : memref<64x128xf32, #tpu.memory_space<vmem>>, vector<64x128xf32>
    %cst = arith.constant dense<0.000000e+00> : vector<128x128xf32>
    %3 = tpu.matmul %1, %2, %cst {dimension_numbers = #tpu.dot_dimension_numbers<[1], [0], [0], [1], [0, 0, 1, 1], [], []>} : vector<128x64xf32>, vector<64x128xf32>, vector<128x128xf32> -> vector<128x128xf32>
    %c0_4 = arith.constant 0 : index
    %c0_5 = arith.constant 0 : index
    %4 = vector.load %arg3[%c0_4, %c0_5] : memref<8x128xf32, #tpu.memory_space<vmem>>, vector<1x128xf32>
    %5 = vector.broadcast %4 : vector<1x128xf32> to vector<128x128xf32>
    %6 = arith.addf %3, %5 : vector<128x128xf32>
    %7 = vector.extract_strided_slice %6 {offsets = [0, 0], sizes = [128, 64], strides = [1, 1]} : vector<128x128xf32> to vector<128x64xf32>
    %8 = vector.extract_strided_slice %6 {offsets = [0, 64], sizes = [128, 64], strides = [1, 1]} : vector<128x128xf32> to vector<128x64xf32>
    %9 = arith.mulf %7, %7 : vector<128x64xf32>
    %cst_6 = arith.constant dense<0.000000e+00> : vector<128xf32>
    %10 = vector.multi_reduction <add>, %9, %cst_6 [1] : vector<128x64xf32> to vector<128xf32>
    %11 = vector.shape_cast %10 : vector<128xf32> to vector<128x1xf32>
    %cst_7 = arith.constant 1.000000e-24 : f32
    %12 = vector.broadcast %cst_7 : f32 to vector<128x1xf32>
    %13 = arith.maximumf %11, %12 : vector<128x1xf32>
    %14 = math.rsqrt %13 : vector<128x1xf32>
    %15 = vector.broadcast %14 : vector<128x1xf32> to vector<128x64xf32>
    %16 = arith.mulf %7, %15 : vector<128x64xf32>
    %17 = arith.mulf %8, %8 : vector<128x64xf32>
    %cst_8 = arith.constant dense<0.000000e+00> : vector<128xf32>
    %18 = vector.multi_reduction <add>, %17, %cst_8 [1] : vector<128x64xf32> to vector<128xf32>
    %19 = vector.shape_cast %18 : vector<128xf32> to vector<128x1xf32>
    %cst_9 = arith.constant 1.000000e-24 : f32
    %20 = vector.broadcast %cst_9 : f32 to vector<128x1xf32>
    %21 = arith.maximumf %19, %20 : vector<128x1xf32>
    %22 = math.rsqrt %21 : vector<128x1xf32>
    %23 = vector.broadcast %22 : vector<128x1xf32> to vector<128x64xf32>
    %24 = arith.mulf %8, %23 : vector<128x64xf32>
    %c1 = arith.constant 1 : index
    %c0_10 = arith.constant 0 : index
    %25 = vector.load %arg3[%c1, %c0_10] : memref<8x128xf32, #tpu.memory_space<vmem>>, vector<1x64xf32>
    %26 = vector.broadcast %25 : vector<1x64xf32> to vector<128x64xf32>
    %27 = arith.mulf %16, %26 : vector<128x64xf32>
    %cst_11 = arith.constant dense<0.000000e+00> : vector<128xf32>
    %28 = vector.multi_reduction <add>, %27, %cst_11 [1] : vector<128x64xf32> to vector<128xf32>
    %29 = vector.shape_cast %28 : vector<128xf32> to vector<128x1xf32>
    %30 = vector.shape_cast %29 : vector<128x1xf32> to vector<2x64x1xf32>
    %31 = arith.mulf %30, %30 : vector<2x64x1xf32>
    %cst_12 = arith.constant dense<0.000000e+00> : vector<2x1xf32>
    %32 = vector.multi_reduction <add>, %31, %cst_12 [1] : vector<2x64x1xf32> to vector<2x1xf32>
    %33 = vector.shape_cast %32 : vector<2x1xf32> to vector<2x1x1xf32>
    %cst_13 = arith.constant 1.000000e-24 : f32
    %34 = vector.broadcast %cst_13 : f32 to vector<2x1x1xf32>
    %35 = arith.maximumf %33, %34 : vector<2x1x1xf32>
    %36 = math.rsqrt %35 : vector<2x1x1xf32>
    %37 = vector.broadcast %36 : vector<2x1x1xf32> to vector<2x64x1xf32>
    %38 = arith.mulf %30, %37 : vector<2x64x1xf32>
    %39 = vector.shape_cast %16 : vector<128x64xf32> to vector<2x64x64xf32>
    %40 = vector.shape_cast %24 : vector<128x64xf32> to vector<2x64x64xf32>
    %41 = vector.broadcast %38 : vector<2x64x1xf32> to vector<2x64x64xf32>
    %42 = arith.mulf %41, %39 : vector<2x64x64xf32>
    %cst_14 = arith.constant dense<0.000000e+00> : vector<2x64xf32>
    %43 = vector.multi_reduction <add>, %42, %cst_14 [1] : vector<2x64x64xf32> to vector<2x64xf32>
    %44 = vector.shape_cast %43 : vector<2x64xf32> to vector<2x1x64xf32>
    %45 = vector.broadcast %44 : vector<2x1x64xf32> to vector<2x64x64xf32>
    %46 = arith.mulf %45, %40 : vector<2x64x64xf32>
    %47 = vector.shape_cast %46 : vector<2x64x64xf32> to vector<128x64xf32>
    %c0_15 = arith.constant 0 : index
    %c0_16 = arith.constant 0 : index
    %c0_17 = arith.constant 0 : index
    %48 = vector.load %arg4[%c0_15, %c0_16, %c0_17] : memref<2x64x64xf32, #tpu.memory_space<vmem>>, vector<1x64x64xf32>
    %49 = vector.shape_cast %48 : vector<1x64x64xf32> to vector<64x64xf32>
    %c1_18 = arith.constant 1 : index
    %c0_19 = arith.constant 0 : index
    %c0_20 = arith.constant 0 : index
    %50 = vector.load %arg4[%c1_18, %c0_19, %c0_20] : memref<2x64x64xf32, #tpu.memory_space<vmem>>, vector<1x64x64xf32>
    %51 = vector.shape_cast %50 : vector<1x64x64xf32> to vector<64x64xf32>
    %c2 = arith.constant 2 : index
    %c0_21 = arith.constant 0 : index
    %52 = vector.load %arg3[%c2, %c0_21] : memref<8x128xf32, #tpu.memory_space<vmem>>, vector<1x64xf32>
    %cst_22 = arith.constant dense<0.000000e+00> : vector<128x64xf32>
    %53 = tpu.matmul %47, %49, %cst_22 {dimension_numbers = #tpu.dot_dimension_numbers<[1], [0], [0], [1], [0, 0, 1, 1], [], []>} : vector<128x64xf32>, vector<64x64xf32>, vector<128x64xf32> -> vector<128x64xf32>
    %cst_23 = arith.constant dense<0.000000e+00> : vector<128x64xf32>
    %54 = tpu.matmul %16, %51, %cst_23 {dimension_numbers = #tpu.dot_dimension_numbers<[1], [0], [0], [1], [0, 0, 1, 1], [], []>} : vector<128x64xf32>, vector<64x64xf32>, vector<128x64xf32> -> vector<128x64xf32>
    %55 = arith.addf %53, %54 : vector<128x64xf32>
    %56 = vector.broadcast %52 : vector<1x64xf32> to vector<128x64xf32>
    %57 = arith.addf %55, %56 : vector<128x64xf32>
    %58 = vector.shape_cast %57 : vector<128x64xf32> to vector<2x64x64xf32>
    %c0_24 = arith.constant 0 : index
    %c0_25 = arith.constant 0 : index
    %c0_26 = arith.constant 0 : index
    %59 = vector.load %arg5[%c0_24, %c0_25, %c0_26] : memref<2x64x64xf32, #tpu.memory_space<vmem>>, vector<2x64x64xf32>
    tpu.vector_store %arg5[%c0_24, %c0_25, %c0_26], %58 {strides = array<i32>} : memref<2x64x64xf32, #tpu.memory_space<vmem>>, vector<2x64x64xf32>,
    return
  }
  func.func @transform_0(%arg0: i32) -> (i32, i32, i32) {
    %c0_i32 = arith.constant 0 : i32
    %c0_i32_0 = arith.constant 0 : i32
    %c0_i32_1 = arith.constant 0 : i32
    return %arg0, %c0_i32, %c0_i32_0 : i32, i32, i32
  }
  func.func @transform_1(%arg0: i32) -> (i32, i32) {
    %c0_i32 = arith.constant 0 : i32
    %c0_i32_0 = arith.constant 0 : i32
    %c0_i32_1 = arith.constant 0 : i32
    return %c0_i32, %c0_i32_0 : i32, i32
  }
  func.func @transform_2(%arg0: i32) -> (i32, i32) {
    %c0_i32 = arith.constant 0 : i32
    %c0_i32_0 = arith.constant 0 : i32
    %c0_i32_1 = arith.constant 0 : i32
    return %c0_i32, %c0_i32_0 : i32, i32
  }
  func.func @transform_3(%arg0: i32) -> (i32, i32, i32) {
    %c0_i32 = arith.constant 0 : i32
    %c0_i32_0 = arith.constant 0 : i32
    %c0_i32_1 = arith.constant 0 : i32
    %c0_i32_2 = arith.constant 0 : i32
    return %c0_i32, %c0_i32_0, %c0_i32_1 : i32, i32, i32
  }
  func.func @transform_4(%arg0: i32) -> (i32, i32, i32) {
    %c0_i32 = arith.constant 0 : i32
    %c0_i32_0 = arith.constant 0 : i32
    %c0_i32_1 = arith.constant 0 : i32
    return %arg0, %c0_i32, %c0_i32_0 : i32, i32, i32
  }
}

</mosaic_0001>

<llo_original>
// kernel: efficient_additive_attention.1
$region0: #{efficient_additive_attention.1}
  #allocation0 [shape = 'u32[]', space=smem, size = 0x4, offset = 0x4, fixed_abs, tag = 'smem constant byte address 0x4 - core index']
  #allocation1 [shape = 'u32[72,128]{1,0:T(1,128)}', space=vmem, size = 0x9000, scoped, tag = 'internal scratch']
  %s0 = inlined_call_operand.vmem [shape: f32[2,64,64], index: 0, kind: input, shape index: {}]
  %s1 = inlined_call_operand.vmem [shape: f32[64,128], index: 1, kind: input, shape index: {}]
  %s2 = inlined_call_operand.vmem [shape: f32[8,128], index: 2, kind: input, shape index: {}]
  %s3 = inlined_call_operand.vmem [shape: f32[2,64,64], index: 3, kind: input, shape index: {}]
  %s4 = inlined_call_operand.hbm [shape: f32[2,64,64], index: 4, kind: output, shape index: {}]
  %s5 = sld [smem:[#allocation0]]
  $region26: #{efficient_additive_attention.1} parent=0
    _
  %s7 = ssub.s32 1, %s5
  %s8 = scalar_select 0, %s7, %s5
  $region1: #{efficient_additive_attention.1} parent=0
    #allocation2 [shape = 'u8[65536]{0}', space=vmem, size = 0x10000, scoped, tag = 'output window, operand 0, single buffered']
    #allocation3 [shape = 's32[1]{0}', space=sflag, size = 0x4, scoped, tag = 'scoped memory for efficient_additive_attention.1']
    %9 = vsyncpa [#allocation3], 0
    // Predicated region
    $region2: #{efficient_additive_attention.1} parent=1 // pred_check
      _
    $region3: #{efficient_additive_attention.1} parent=1 // pred_check_branch
      %11 = sbr.rel (0) target = $region5
    $region4: #{efficient_additive_attention.1} parent=1 // pred_region
      _
    $region5: #{efficient_additive_attention.1} parent=1 // pred_fallthru
      _
    // Predicated region
    $region6: #{efficient_additive_attention.1} parent=1 // pred_check
      _
    $region7: #{efficient_additive_attention.1} parent=1 // pred_check_branch
      %13 = sbr.rel (0) target = $region9
    $region8: #{efficient_additive_attention.1} parent=1 // pred_region
      _
    $region9: #{efficient_additive_attention.1} parent=1 // pred_fallthru
      _
    // Predicated region
    $region10: #{efficient_additive_attention.1} parent=1 // pred_check
      _
    $region11: #{efficient_additive_attention.1} parent=1 // pred_check_branch
      %15 = sbr.rel (0) target = $region13
    $region12: #{efficient_additive_attention.1} parent=1 // pred_region
      _
    $region13: #{efficient_additive_attention.1} parent=1 // pred_fallthru
      _
    // Predicated region
    $region14: #{efficient_additive_attention.1} parent=1 // pred_check
      _
    $region15: #{efficient_additive_attention.1} parent=1 // pred_check_branch
      %17 = sbr.rel (0) target = $region17
    $region16: #{efficient_additive_attention.1} parent=1 // pred_region
      _
    $region17: #{efficient_additive_attention.1} parent=1 // pred_fallthru
      _
    %v18 = vld [vmem:[%s0] sm:$0xff]
    %v19 = vld [vmem:[%s0 + $0x8] sm:$0xff]
    %v20 = vld [vmem:[%s0 + $0x10] sm:$0xff]
    %v21 = vld [vmem:[%s0 + $0x18] sm:$0xff]
    %v22 = vld [vmem:[%s0 + $0x20] sm:$0xff]
    %v23 = vld [vmem:[%s0 + $0x28] sm:$0xff]
    %v24 = vld [vmem:[%s0 + $0x30] sm:$0xff]
    %v25 = vld [vmem:[%s0 + $0x38] sm:$0xff]
    %v26 = vld [vmem:[%s0 + $0x40] sm:$0xff]
    %v27 = vld [vmem:[%s0 + $0x48] sm:$0xff]
    %v28 = vld [vmem:[%s0 + $0x50] sm:$0xff]
    %v29 = vld [vmem:[%s0 + $0x58] sm:$0xff]
    %v30 = vld [vmem:[%s0 + $0x60] sm:$0xff]
    %v31 = vld [vmem:[%s0 + $0x68] sm:$0xff]
    %v32 = vld [vmem:[%s0 + $0x70] sm:$0xff]
    %v33 = vld [vmem:[%s0 + $0x78] sm:$0xff]
    %v34 = vld [vmem:[%s1] sm:$0xff]
    %v35 = vld [vmem:[%s1 + $0x8] sm:$0xff]
    %v36 = vld [vmem:[%s1 + $0x10] sm:$0xff]
    %v37 = vld [vmem:[%s1 + $0x18] sm:$0xff]
    %v38 = vld [vmem:[%s1 + $0x20] sm:$0xff]
    %v39 = vld [vmem:[%s1 + $0x28] sm:$0xff]
    %v40 = vld [vmem:[%s1 + $0x30] sm:$0xff]
    %v41 = vld [vmem:[%s1 + $0x38] sm:$0xff]
    %v42 = vld [vmem:[%s2] sm:$0x1]
    %v43 = vperm.slane %v42, 0
    %vm44 = vcmask 523264
    %v46 = vsel %vm44, %v18, 0
    %v49 = vsel %vm44, %v19, 0
    %v52 = vsel %vm44, %v20, 0
    %v55 = vsel %vm44, %v21, 0
    %v58 = vsel %vm44, %v22, 0
    %v61 = vsel %vm44, %v23, 0
    %v64 = vsel %vm44, %v24, 0
    %v67 = vsel %vm44, %v25, 0
    %v70 = vsel %vm44, %v26, 0
    %v73 = vsel %vm44, %v27, 0
    %v76 = vsel %vm44, %v28, 0
    %v79 = vsel %vm44, %v29, 0
    %v82 = vsel %vm44, %v30, 0
    %v85 = vsel %vm44, %v31, 0
    %v88 = vsel %vm44, %v32, 0
    %v91 = vsel %vm44, %v33, 0
    %93 = vmatpush.msra.mxu0 0.0
    %94 = vmatpush.msra.mxu0 0.0
    %95 = vmatpush.msra.mxu0 0.0
    %96 = vmatpush.msra.mxu0 0.0
    %97 = vmatpush.msra.mxu0 0.0
    %98 = vmatpush.msra.mxu0 0.0
    %99 = vmatpush.msra.mxu0 0.0
    %100 = vmatpush.msra.mxu0 0.0
    %101 = vmatpush.msra.mxu0 %v41
    %102 = vmatpush.msra.mxu0 %v40
    %103 = vmatpush.msra.mxu0 %v39
    %104 = vmatpush.msra.mxu0 %v38
    %105 = vmatpush.msra.mxu0 %v37
    %106 = vmatpush.msra.mxu0 %v36
    %107 = vmatpush.msra.mxu0 %v35
    %108 = vmatpush.msra.mxu0 %v34
    %109 = vmatmul.f32.gmra.mxu0 %v46
    %v110 = vpop.f32.mrf.mxu0
    %v111 = vadd.f32 %v43, %v110
    %112 = vmatmul.f32.gmra.mxu0 %v49
    %v113 = vpop.f32.mrf.mxu0
    %v114 = vadd.f32 %v43, %v113
    %115 = vmatmul.f32.gmra.mxu0 %v52
    %v116 = vpop.f32.mrf.mxu0
    %v117 = vadd.f32 %v43, %v116
    %118 = vmatmul.f32.gmra.mxu0 %v55
    %v119 = vpop.f32.mrf.mxu0
    %v120 = vadd.f32 %v43, %v119
    %121 = vmatmul.f32.gmra.mxu0 %v58
    %v122 = vpop.f32.mrf.mxu0
    %v123 = vadd.f32 %v43, %v122
    %124 = vmatmul.f32.gmra.mxu0 %v61
    %v125 = vpop.f32.mrf.mxu0
    %v126 = vadd.f32 %v43, %v125
    %127 = vmatmul.f32.gmra.mxu0 %v64
    %v128 = vpop.f32.mrf.mxu0
    %v129 = vadd.f32 %v43, %v128
    %130 = vmatmul.f32.gmra.mxu0 %v67
    %v131 = vpop.f32.mrf.mxu0
    %v132 = vadd.f32 %v43, %v131
    %133 = vmatmul.f32.gmra.mxu0 %v70
    %v134 = vpop.f32.mrf.mxu0
    %v135 = vadd.f32 %v43, %v134
    %136 = vmatmul.f32.gmra.mxu0 %v73
    %v137 = vpop.f32.mrf.mxu0
    %v138 = vadd.f32 %v43, %v137
    %139 = vmatmul.f32.gmra.mxu0 %v76
    %v140 = vpop.f32.mrf.mxu0
    %v141 = vadd.f32 %v43, %v140
    %142 = vmatmul.f32.gmra.mxu0 %v79
    %v143 = vpop.f32.mrf.mxu0
    %v144 = vadd.f32 %v43, %v143
    %145 = vmatmul.f32.gmra.mxu0 %v82
    %v146 = vpop.f32.mrf.mxu0
    %v147 = vadd.f32 %v43, %v146
    %148 = vmatmul.f32.gmra.mxu0 %v85
    %v149 = vpop.f32.mrf.mxu0
    %v150 = vadd.f32 %v43, %v149
    %151 = vmatmul.f32.gmra.mxu0 %v88
    %v152 = vpop.f32.mrf.mxu0
    %v153 = vadd.f32 %v43, %v152
    %154 = vmatmul.f32.gmra.mxu0 %v91
    %v155 = vpop.f32.mrf.mxu0
    %v156 = vadd.f32 %v43, %v155
    %157 = vdwg.mxu0
    %v158 = vmul.f32 %v111, %v111
    %v159 = vmul.f32 %v114, %v114
    %v160 = vmul.f32 %v117, %v117
    %v161 = vmul.f32 %v120, %v120
    %v162 = vmul.f32 %v123, %v123
    %v163 = vmul.f32 %v126, %v126
    %v164 = vmul.f32 %v129, %v129
    %v165 = vmul.f32 %v132, %v132
    %v166 = vmul.f32 %v135, %v135
    %v167 = vmul.f32 %v138, %v138
    %v168 = vmul.f32 %v141, %v141
    %v169 = vmul.f32 %v144, %v144
    %v170 = vmul.f32 %v147, %v147
    %v171 = vmul.f32 %v150, %v150
    %v172 = vmul.f32 %v153, %v153
    %v173 = vmul.f32 %v156, %v156
    %v174 = vsel %vm44, %v158, 0.0
    %175 = vadd.xlane.f32.xlu0 %v174
    %v176 = vpop.xlane.xlu0 %175
    %v177 = vsel %vm44, %v159, 0.0
    %178 = vadd.xlane.f32.xlu0 %v177
    %v179 = vpop.xlane.xlu0 %178
    %v180 = vsel %vm44, %v160, 0.0
    %181 = vadd.xlane.f32.xlu0 %v180
    %v182 = vpop.xlane.xlu0 %181
    %v183 = vsel %vm44, %v161, 0.0
    %184 = vadd.xlane.f32.xlu0 %v183
    %v185 = vpop.xlane.xlu0 %184
    %v186 = vsel %vm44, %v162, 0.0
    %187 = vadd.xlane.f32.xlu0 %v186
    %v188 = vpop.xlane.xlu0 %187
    %v189 = vsel %vm44, %v163, 0.0
    %190 = vadd.xlane.f32.xlu0 %v189
    %v191 = vpop.xlane.xlu0 %190
    %v192 = vsel %vm44, %v164, 0.0
    %193 = vadd.xlane.f32.xlu0 %v192
    %v194 = vpop.xlane.xlu0 %193
    %v195 = vsel %vm44, %v165, 0.0
    %196 = vadd.xlane.f32.xlu0 %v195
    %v197 = vpop.xlane.xlu0 %196
    %v198 = vsel %vm44, %v166, 0.0
    %199 = vadd.xlane.f32.xlu0 %v198
    %v200 = vpop.xlane.xlu0 %199
    %v201 = vsel %vm44, %v167, 0.0
    %202 = vadd.xlane.f32.xlu0 %v201
    %v203 = vpop.xlane.xlu0 %202
    %v204 = vsel %vm44, %v168, 0.0
    %205 = vadd.xlane.f32.xlu0 %v204
    %v206 = vpop.xlane.xlu0 %205
    %v207 = vsel %vm44, %v169, 0.0
    %208 = vadd.xlane.f32.xlu0 %v207
    %v209 = vpop.xlane.xlu0 %208
    %v210 = vsel %vm44, %v170, 0.0
    %211 = vadd.xlane.f32.xlu0 %v210
    %v212 = vpop.xlane.xlu0 %211
    %v213 = vsel %vm44, %v171, 0.0
    %214 = vadd.xlane.f32.xlu0 %v213
    %v215 = vpop.xlane.xlu0 %214
    %v216 = vsel %vm44, %v172, 0.0
    %217 = vadd.xlane.f32.xlu0 %v216
    %v218 = vpop.xlane.xlu0 %217
    %v219 = vsel %vm44, %v173, 0.0
    %220 = vadd.xlane.f32.xlu0 %v219
    %v221 = vpop.xlane.xlu0 %220
    %v222 = vmax.f32 %v176, 1e-24
    %v223 = vmax.f32 %v179, 1e-24
    %v224 = vmax.f32 %v182, 1e-24
    %v225 = vmax.f32 %v185, 1e-24
    %v226 = vmax.f32 %v188, 1e-24
    %v227 = vmax.f32 %v191, 1e-24
    %v228 = vmax.f32 %v194, 1e-24
    %v229 = vmax.f32 %v197, 1e-24
    %v230 = vmax.f32 %v200, 1e-24
    %v231 = vmax.f32 %v203, 1e-24
    %v232 = vmax.f32 %v206, 1e-24
    %v233 = vmax.f32 %v209, 1e-24
    %v234 = vmax.f32 %v212, 1e-24
    %v235 = vmax.f32 %v215, 1e-24
    %v236 = vmax.f32 %v218, 1e-24
    %v237 = vmax.f32 %v221, 1e-24
    %v238 = vrsqrt.pop %v222
    %v239 = vmul.f32 %v238, %v222
    %v240 = vmul.f32 %v239, %v238
    %v241 = vmul.f32 0.5, %v240
    %v242 = vsub.f32 1.5, %v241
    %v243 = vmul.f32 %v238, %v242
    %vm244 = vweird.f32 %v222
    %vm245 = vweird.f32 %v238
    %vm246 = vmor %vm244, %vm245
    %v247 = vsel %vm246, %v238, %v243
    %v248 = vrsqrt.pop %v223
    %v249 = vmul.f32 %v248, %v223
    %v250 = vmul.f32 %v249, %v248
    %v251 = vmul.f32 0.5, %v250
    %v252 = vsub.f32 1.5, %v251
    %v253 = vmul.f32 %v248, %v252
    %vm254 = vweird.f32 %v223
    %vm255 = vweird.f32 %v248
    %vm256 = vmor %vm254, %vm255
    %v257 = vsel %vm256, %v248, %v253
    %v258 = vrsqrt.pop %v224
    %v259 = vmul.f32 %v258, %v224
    %v260 = vmul.f32 %v259, %v258
    %v261 = vmul.f32 0.5, %v260
    %v262 = vsub.f32 1.5, %v261
    %v263 = vmul.f32 %v258, %v262
    %vm264 = vweird.f32 %v224
    %vm265 = vweird.f32 %v258
    %vm266 = vmor %vm264, %vm265
    %v267 = vsel %vm266, %v258, %v263
    %v268 = vrsqrt.pop %v225
    %v269 = vmul.f32 %v268, %v225
    %v270 = vmul.f32 %v269, %v268
    %v271 = vmul.f32 0.5, %v270
    %v272 = vsub.f32 1.5, %v271
    %v273 = vmul.f32 %v268, %v272
    %vm274 = vweird.f32 %v225
    %vm275 = vweird.f32 %v268
    %vm276 = vmor %vm274, %vm275
    %v277 = vsel %vm276, %v268, %v273
    %v278 = vrsqrt.pop %v226
    %v279 = vmul.f32 %v278, %v226
    %v280 = vmul.f32 %v279, %v278
    %v281 = vmul.f32 0.5, %v280
    %v282 = vsub.f32 1.5, %v281
    %v283 = vmul.f32 %v278, %v282
    %vm284 = vweird.f32 %v226
    %vm285 = vweird.f32 %v278
    %vm286 = vmor %vm284, %vm285
    %v287 = vsel %vm286, %v278, %v283
    %v288 = vrsqrt.pop %v227
    %v289 = vmul.f32 %v288, %v227
    %v290 = vmul.f32 %v289, %v288
    %v291 = vmul.f32 0.5, %v290
    %v292 = vsub.f32 1.5, %v291
    %v293 = vmul.f32 %v288, %v292
    %vm294 = vweird.f32 %v227
    %vm295 = vweird.f32 %v288
    %vm296 = vmor %vm294, %vm295
    %v297 = vsel %vm296, %v288, %v293
    %v298 = vrsqrt.pop %v228
    %v299 = vmul.f32 %v298, %v228
    %v300 = vmul.f32 %v299, %v298
    %v301 = vmul.f32 0.5, %v300
    %v302 = vsub.f32 1.5, %v301
    %v303 = vmul.f32 %v298, %v302
    %vm304 = vweird.f32 %v228
    %vm305 = vweird.f32 %v298
    %vm306 = vmor %vm304, %vm305
    %v307 = vsel %vm306, %v298, %v303
    %v308 = vrsqrt.pop %v229
    %v309 = vmul.f32 %v308, %v229
    %v310 = vmul.f32 %v309, %v308
    %v311 = vmul.f32 0.5, %v310
    %v312 = vsub.f32 1.5, %v311
    %v313 = vmul.f32 %v308, %v312
    %vm314 = vweird.f32 %v229
    %vm315 = vweird.f32 %v308
    %vm316 = vmor %vm314, %vm315
    %v317 = vsel %vm316, %v308, %v313
    %v318 = vrsqrt.pop %v230
    %v319 = vmul.f32 %v318, %v230
    %v320 = vmul.f32 %v319, %v318
    %v321 = vmul.f32 0.5, %v320
    %v322 = vsub.f32 1.5, %v321
    %v323 = vmul.f32 %v318, %v322
    %vm324 = vweird.f32 %v230
    %vm325 = vweird.f32 %v318
    %vm326 = vmor %vm324, %vm325
    %v327 = vsel %vm326, %v318, %v323
    %v328 = vrsqrt.pop %v231
    %v329 = vmul.f32 %v328, %v231
    %v330 = vmul.f32 %v329, %v328
    %v331 = vmul.f32 0.5, %v330
    %v332 = vsub.f32 1.5, %v331
    %v333 = vmul.f32 %v328, %v332
    %vm334 = vweird.f32 %v231
    %vm335 = vweird.f32 %v328
    %vm336 = vmor %vm334, %vm335
    %v337 = vsel %vm336, %v328, %v333
    %v338 = vrsqrt.pop %v232
    %v339 = vmul.f32 %v338, %v232
    %v340 = vmul.f32 %v339, %v338
    %v341 = vmul.f32 0.5, %v340
    %v342 = vsub.f32 1.5, %v341
    %v343 = vmul.f32 %v338, %v342
    %vm344 = vweird.f32 %v232
    %vm345 = vweird.f32 %v338
    %vm346 = vmor %vm344, %vm345
    %v347 = vsel %vm346, %v338, %v343
    %v348 = vrsqrt.pop %v233
    %v349 = vmul.f32 %v348, %v233
    %v350 = vmul.f32 %v349, %v348
    %v351 = vmul.f32 0.5, %v350
    %v352 = vsub.f32 1.5, %v351
    %v353 = vmul.f32 %v348, %v352
    %vm354 = vweird.f32 %v233
    %vm355 = vweird.f32 %v348
    %vm356 = vmor %vm354, %vm355
    %v357 = vsel %vm356, %v348, %v353
    %v358 = vrsqrt.pop %v234
    %v359 = vmul.f32 %v358, %v234
    %v360 = vmul.f32 %v359, %v358
    %v361 = vmul.f32 0.5, %v360
    %v362 = vsub.f32 1.5, %v361
    %v363 = vmul.f32 %v358, %v362
    %vm364 = vweird.f32 %v234
    %vm365 = vweird.f32 %v358
    %vm366 = vmor %vm364, %vm365
    %v367 = vsel %vm366, %v358, %v363
    %v368 = vrsqrt.pop %v235
    %v369 = vmul.f32 %v368, %v235
    %v370 = vmul.f32 %v369, %v368
    %v371 = vmul.f32 0.5, %v370
    %v372 = vsub.f32 1.5, %v371
    %v373 = vmul.f32 %v368, %v372
    %vm374 = vweird.f32 %v235
    %vm375 = vweird.f32 %v368
    %vm376 = vmor %vm374, %vm375
    %v377 = vsel %vm376, %v368, %v373
    %v378 = vrsqrt.pop %v236
    %v379 = vmul.f32 %v378, %v236
    %v380 = vmul.f32 %v379, %v378
    %v381 = vmul.f32 0.5, %v380
    %v382 = vsub.f32 1.5, %v381
    %v383 = vmul.f32 %v378, %v382
    %vm384 = vweird.f32 %v236
    %vm385 = vweird.f32 %v378
    %vm386 = vmor %vm384, %vm385
    %v387 = vsel %vm386, %v378, %v383
    %v388 = vrsqrt.pop %v237
    %v389 = vmul.f32 %v388, %v237
    %v390 = vmul.f32 %v389, %v388
    %v391 = vmul.f32 0.5, %v390
    %v392 = vsub.f32 1.5, %v391
    %v393 = vmul.f32 %v388, %v392
    %vm394 = vweird.f32 %v237
    %vm395 = vweird.f32 %v388
    %vm396 = vmor %vm394, %vm395
    %v397 = vsel %vm396, %v388, %v393
    %v398 = vmul.f32 %v111, %v247
    %v399 = vmul.f32 %v114, %v257
    %v400 = vmul.f32 %v117, %v267
    %v401 = vmul.f32 %v120, %v277
    %v402 = vmul.f32 %v123, %v287
    %v403 = vmul.f32 %v126, %v297
    %v404 = vmul.f32 %v129, %v307
    %v405 = vmul.f32 %v132, %v317
    %v406 = vmul.f32 %v135, %v327
    %v407 = vmul.f32 %v138, %v337
    %v408 = vmul.f32 %v141, %v347
    %v409 = vmul.f32 %v144, %v357
    %v410 = vmul.f32 %v147, %v367
    %v411 = vmul.f32 %v150, %v377
    %v412 = vmul.f32 %v153, %v387
    %v413 = vmul.f32 %v156, %v397
    %430 = vrot.lane.b32.xlu0 %v158, 64
    %v431 = vpop.permute.xlu0 %430
    %432 = vrot.lane.b32.xlu0 %v159, 64
    %v433 = vpop.permute.xlu0 %432
    %434 = vrot.lane.b32.xlu0 %v160, 64
    %v435 = vpop.permute.xlu0 %434
    %436 = vrot.lane.b32.xlu0 %v161, 64
    %v437 = vpop.permute.xlu0 %436
    %438 = vrot.lane.b32.xlu0 %v162, 64
    %v439 = vpop.permute.xlu0 %438
    %440 = vrot.lane.b32.xlu0 %v163, 64
    %v441 = vpop.permute.xlu0 %440
    %442 = vrot.lane.b32.xlu0 %v164, 64
    %v443 = vpop.permute.xlu0 %442
    %444 = vrot.lane.b32.xlu0 %v165, 64
    %v445 = vpop.permute.xlu0 %444
    %446 = vrot.lane.b32.xlu0 %v166, 64
    %v447 = vpop.permute.xlu0 %446
    %448 = vrot.lane.b32.xlu0 %v167, 64
    %v449 = vpop.permute.xlu0 %448
    %450 = vrot.lane.b32.xlu0 %v168, 64
    %v451 = vpop.permute.xlu0 %450
    %452 = vrot.lane.b32.xlu0 %v169, 64
    %v453 = vpop.permute.xlu0 %452
    %454 = vrot.lane.b32.xlu0 %v170, 64
    %v455 = vpop.permute.xlu0 %454
    %456 = vrot.lane.b32.xlu0 %v171, 64
    %v457 = vpop.permute.xlu0 %456
    %458 = vrot.lane.b32.xlu0 %v172, 64
    %v459 = vpop.permute.xlu0 %458
    %460 = vrot.lane.b32.xlu0 %v173, 64
    %v461 = vpop.permute.xlu0 %460
    %v478 = vsel %vm44, %v431, 0.0
    %479 = vadd.xlane.f32.xlu0 %v478
    %v480 = vpop.xlane.xlu0 %479
    %v481 = vsel %vm44, %v433, 0.0
    %482 = vadd.xlane.f32.xlu0 %v481
    %v483 = vpop.xlane.xlu0 %482
    %v484 = vsel %vm44, %v435, 0.0
    %485 = vadd.xlane.f32.xlu0 %v484
    %v486 = vpop.xlane.xlu0 %485
    %v487 = vsel %vm44, %v437, 0.0
    %488 = vadd.xlane.f32.xlu0 %v487
    %v489 = vpop.xlane.xlu0 %488
    %v490 = vsel %vm44, %v439, 0.0
    %491 = vadd.xlane.f32.xlu0 %v490
    %v492 = vpop.xlane.xlu0 %491
    %v493 = vsel %vm44, %v441, 0.0
    %494 = vadd.xlane.f32.xlu0 %v493
    %v495 = vpop.xlane.xlu0 %494
    %v496 = vsel %vm44, %v443, 0.0
    %497 = vadd.xlane.f32.xlu0 %v496
    %v498 = vpop.xlane.xlu0 %497
    %v499 = vsel %vm44, %v445, 0.0
    %500 = vadd.xlane.f32.xlu0 %v499
    %v501 = vpop.xlane.xlu0 %500
    %v502 = vsel %vm44, %v447, 0.0
    %503 = vadd.xlane.f32.xlu0 %v502
    %v504 = vpop.xlane.xlu0 %503
    %v505 = vsel %vm44, %v449, 0.0
    %506 = vadd.xlane.f32.xlu0 %v505
    %v507 = vpop.xlane.xlu0 %506
    %v508 = vsel %vm44, %v451, 0.0
    %509 = vadd.xlane.f32.xlu0 %v508
    %v510 = vpop.xlane.xlu0 %509
    %v511 = vsel %vm44, %v453, 0.0
    %512 = vadd.xlane.f32.xlu0 %v511
    %v513 = vpop.xlane.xlu0 %512
    %v514 = vsel %vm44, %v455, 0.0
    %515 = vadd.xlane.f32.xlu0 %v514
    %v516 = vpop.xlane.xlu0 %515
    %v517 = vsel %vm44, %v457, 0.0
    %518 = vadd.xlane.f32.xlu0 %v517
    %v519 = vpop.xlane.xlu0 %518
    %v520 = vsel %vm44, %v459, 0.0
    %521 = vadd.xlane.f32.xlu0 %v520
    %v522 = vpop.xlane.xlu0 %521
    %v523 = vsel %vm44, %v461, 0.0
    %524 = vadd.xlane.f32.xlu0 %v523
    %v525 = vpop.xlane.xlu0 %524
    %v526 = vmax.f32 %v480, 1e-24
    %v527 = vmax.f32 %v483, 1e-24
    %v528 = vmax.f32 %v486, 1e-24
    %v529 = vmax.f32 %v489, 1e-24
    %v530 = vmax.f32 %v492, 1e-24
    %v531 = vmax.f32 %v495, 1e-24
    %v532 = vmax.f32 %v498, 1e-24
    %v533 = vmax.f32 %v501, 1e-24
    %v534 = vmax.f32 %v504, 1e-24
    %v535 = vmax.f32 %v507, 1e-24
    %v536 = vmax.f32 %v510, 1e-24
    %v537 = vmax.f32 %v513, 1e-24
    %v538 = vmax.f32 %v516, 1e-24
    %v539 = vmax.f32 %v519, 1e-24
    %v540 = vmax.f32 %v522, 1e-24
    %v541 = vmax.f32 %v525, 1e-24
    %v542 = vrsqrt.pop %v526
    %v543 = vmul.f32 %v542, %v526
    %v544 = vmul.f32 %v543, %v542
    %v545 = vmul.f32 0.5, %v544
    %v546 = vsub.f32 1.5, %v545
    %v547 = vmul.f32 %v542, %v546
    %vm548 = vweird.f32 %v526
    %vm549 = vweird.f32 %v542
    %vm550 = vmor %vm548, %vm549
    %v551 = vsel %vm550, %v542, %v547
    %v552 = vrsqrt.pop %v527
    %v553 = vmul.f32 %v552, %v527
    %v554 = vmul.f32 %v553, %v552
    %v555 = vmul.f32 0.5, %v554
    %v556 = vsub.f32 1.5, %v555
    %v557 = vmul.f32 %v552, %v556
    %vm558 = vweird.f32 %v527
    %vm559 = vweird.f32 %v552
    %vm560 = vmor %vm558, %vm559
    %v561 = vsel %vm560, %v552, %v557
    %v562 = vrsqrt.pop %v528
    %v563 = vmul.f32 %v562, %v528
    %v564 = vmul.f32 %v563, %v562
    %v565 = vmul.f32 0.5, %v564
    %v566 = vsub.f32 1.5, %v565
    %v567 = vmul.f32 %v562, %v566
    %vm568 = vweird.f32 %v528
    %vm569 = vweird.f32 %v562
    %vm570 = vmor %vm568, %vm569
    %v571 = vsel %vm570, %v562, %v567
    %v572 = vrsqrt.pop %v529
    %v573 = vmul.f32 %v572, %v529
    %v574 = vmul.f32 %v573, %v572
    %v575 = vmul.f32 0.5, %v574
    %v576 = vsub.f32 1.5, %v575
    %v577 = vmul.f32 %v572, %v576
    %vm578 = vweird.f32 %v529
    %vm579 = vweird.f32 %v572
    %vm580 = vmor %vm578, %vm579
    %v581 = vsel %vm580, %v572, %v577
    %v582 = vrsqrt.pop %v530
    %v583 = vmul.f32 %v582, %v530
    %v584 = vmul.f32 %v583, %v582
    %v585 = vmul.f32 0.5, %v584
    %v586 = vsub.f32 1.5, %v585
    %v587 = vmul.f32 %v582, %v586
    %vm588 = vweird.f32 %v530
    %vm589 = vweird.f32 %v582
    %vm590 = vmor %vm588, %vm589
    %v591 = vsel %vm590, %v582, %v587
    %v592 = vrsqrt.pop %v531
    %v593 = vmul.f32 %v592, %v531
    %v594 = vmul.f32 %v593, %v592
    %v595 = vmul.f32 0.5, %v594
    %v596 = vsub.f32 1.5, %v595
    %v597 = vmul.f32 %v592, %v596
    %vm598 = vweird.f32 %v531
    %vm599 = vweird.f32 %v592
    %vm600 = vmor %vm598, %vm599
    %v601 = vsel %vm600, %v592, %v597
    %v602 = vrsqrt.pop %v532
    %v603 = vmul.f32 %v602, %v532
    %v604 = vmul.f32 %v603, %v602
    %v605 = vmul.f32 0.5, %v604
    %v606 = vsub.f32 1.5, %v605
    %v607 = vmul.f32 %v602, %v606
    %vm608 = vweird.f32 %v532
    %vm609 = vweird.f32 %v602
    %vm610 = vmor %vm608, %vm609
    %v611 = vsel %vm610, %v602, %v607
    %v612 = vrsqrt.pop %v533
    %v613 = vmul.f32 %v612, %v533
    %v614 = vmul.f32 %v613, %v612
    %v615 = vmul.f32 0.5, %v614
    %v616 = vsub.f32 1.5, %v615
    %v617 = vmul.f32 %v612, %v616
    %vm618 = vweird.f32 %v533
    %vm619 = vweird.f32 %v612
    %vm620 = vmor %vm618, %vm619
    %v621 = vsel %vm620, %v612, %v617
    %v622 = vrsqrt.pop %v534
    %v623 = vmul.f32 %v622, %v534
    %v624 = vmul.f32 %v623, %v622
    %v625 = vmul.f32 0.5, %v624
    %v626 = vsub.f32 1.5, %v625
    %v627 = vmul.f32 %v622, %v626
    %vm628 = vweird.f32 %v534
    %vm629 = vweird.f32 %v622
    %vm630 = vmor %vm628, %vm629
    %v631 = vsel %vm630, %v622, %v627
    %v632 = vrsqrt.pop %v535
    %v633 = vmul.f32 %v632, %v535
    %v634 = vmul.f32 %v633, %v632
    %v635 = vmul.f32 0.5, %v634
    %v636 = vsub.f32 1.5, %v635
    %v637 = vmul.f32 %v632, %v636
    %vm638 = vweird.f32 %v535
    %vm639 = vweird.f32 %v632
    %vm640 = vmor %vm638, %vm639
    %v641 = vsel %vm640, %v632, %v637
    %v642 = vrsqrt.pop %v536
    %v643 = vmul.f32 %v642, %v536
    %v644 = vmul.f32 %v643, %v642
    %v645 = vmul.f32 0.5, %v644
    %v646 = vsub.f32 1.5, %v645
    %v647 = vmul.f32 %v642, %v646
    %vm648 = vweird.f32 %v536
    %vm649 = vweird.f32 %v642
    %vm650 = vmor %vm648, %vm649
    %v651 = vsel %vm650, %v642, %v647
    %v652 = vrsqrt.pop %v537
    %v653 = vmul.f32 %v652, %v537
    %v654 = vmul.f32 %v653, %v652
    %v655 = vmul.f32 0.5, %v654
    %v656 = vsub.f32 1.5, %v655
    %v657 = vmul.f32 %v652, %v656
    %vm658 = vweird.f32 %v537
    %vm659 = vweird.f32 %v652
    %vm660 = vmor %vm658, %vm659
    %v661 = vsel %vm660, %v652, %v657
    %v662 = vrsqrt.pop %v538
    %v663 = vmul.f32 %v662, %v538
    %v664 = vmul.f32 %v663, %v662
    %v665 = vmul.f32 0.5, %v664
    %v666 = vsub.f32 1.5, %v665
    %v667 = vmul.f32 %v662, %v666
    %vm668 = vweird.f32 %v538
    %vm669 = vweird.f32 %v662
    %vm670 = vmor %vm668, %vm669
    %v671 = vsel %vm670, %v662, %v667
    %v672 = vrsqrt.pop %v539
    %v673 = vmul.f32 %v672, %v539
    %v674 = vmul.f32 %v673, %v672
    %v675 = vmul.f32 0.5, %v674
    %v676 = vsub.f32 1.5, %v675
    %v677 = vmul.f32 %v672, %v676
    %vm678 = vweird.f32 %v539
    %vm679 = vweird.f32 %v672
    %vm680 = vmor %vm678, %vm679
    %v681 = vsel %vm680, %v672, %v677
    %v682 = vrsqrt.pop %v540
    %v683 = vmul.f32 %v682, %v540
    %v684 = vmul.f32 %v683, %v682
    %v685 = vmul.f32 0.5, %v684
    %v686 = vsub.f32 1.5, %v685
    %v687 = vmul.f32 %v682, %v686
    %vm688 = vweird.f32 %v540
    %vm689 = vweird.f32 %v682
    %vm690 = vmor %vm688, %vm689
    %v691 = vsel %vm690, %v682, %v687
    %v692 = vrsqrt.pop %v541
    %v693 = vmul.f32 %v692, %v541
    %v694 = vmul.f32 %v693, %v692
    %v695 = vmul.f32 0.5, %v694
    %v696 = vsub.f32 1.5, %v695
    %v697 = vmul.f32 %v692, %v696
    %vm698 = vweird.f32 %v541
    %vm699 = vweird.f32 %v692
    %vm700 = vmor %vm698, %vm699
    %v701 = vsel %vm700, %v692, %v697
    %v702 = vmul.f32 %v111, %v551
    %v703 = vmul.f32 %v114, %v561
    %v704 = vmul.f32 %v117, %v571
    %v705 = vmul.f32 %v120, %v581
    %v706 = vmul.f32 %v123, %v591
    %v707 = vmul.f32 %v126, %v601
    %v708 = vmul.f32 %v129, %v611
    %v709 = vmul.f32 %v132, %v621
    %v710 = vmul.f32 %v135, %v631
    %v711 = vmul.f32 %v138, %v641
    %v712 = vmul.f32 %v141, %v651
    %v713 = vmul.f32 %v144, %v661
    %v714 = vmul.f32 %v147, %v671
    %v715 = vmul.f32 %v150, %v681
    %v716 = vmul.f32 %v153, %v691
    %v717 = vmul.f32 %v156, %v701
    %v718 = vld [vmem:[%s2 + $0x1] sm:$0x1]
    %v719 = vperm.slane %v718, 0
    %v720 = vmul.f32 %v398, %v719
    %v721 = vmul.f32 %v399, %v719
    %v722 = vmul.f32 %v400, %v719
    %v723 = vmul.f32 %v401, %v719
    %v724 = vmul.f32 %v402, %v719
    %v725 = vmul.f32 %v403, %v719
    %v726 = vmul.f32 %v404, %v719
    %v727 = vmul.f32 %v405, %v719
    %v728 = vmul.f32 %v406, %v719
    %v729 = vmul.f32 %v407, %v719
    %v730 = vmul.f32 %v408, %v719
    %v731 = vmul.f32 %v409, %v719
    %v732 = vmul.f32 %v410, %v719
    %v733 = vmul.f32 %v411, %v719
    %v734 = vmul.f32 %v412, %v719
    %v735 = vmul.f32 %v413, %v719
    %v736 = vsel %vm44, %v720, 0.0
    %737 = vadd.xlane.f32.xlu0 %v736
    %v738 = vpop.xlane.xlu0 %737
    %v739 = vsel %vm44, %v721, 0.0
    %740 = vadd.xlane.f32.xlu0 %v739
    %v741 = vpop.xlane.xlu0 %740
    %v742 = vsel %vm44, %v722, 0.0
    %743 = vadd.xlane.f32.xlu0 %v742
    %v744 = vpop.xlane.xlu0 %743
    %v745 = vsel %vm44, %v723, 0.0
    %746 = vadd.xlane.f32.xlu0 %v745
    %v747 = vpop.xlane.xlu0 %746
    %v748 = vsel %vm44, %v724, 0.0
    %749 = vadd.xlane.f32.xlu0 %v748
    %v750 = vpop.xlane.xlu0 %749
    %v751 = vsel %vm44, %v725, 0.0
    %752 = vadd.xlane.f32.xlu0 %v751
    %v753 = vpop.xlane.xlu0 %752
    %v754 = vsel %vm44, %v726, 0.0
    %755 = vadd.xlane.f32.xlu0 %v754
    %v756 = vpop.xlane.xlu0 %755
    %v757 = vsel %vm44, %v727, 0.0
    %758 = vadd.xlane.f32.xlu0 %v757
    %v759 = vpop.xlane.xlu0 %758
    %v760 = vsel %vm44, %v728, 0.0
    %761 = vadd.xlane.f32.xlu0 %v760
    %v762 = vpop.xlane.xlu0 %761
    %v763 = vsel %vm44, %v729, 0.0
    %764 = vadd.xlane.f32.xlu0 %v763
    %v765 = vpop.xlane.xlu0 %764
    %v766 = vsel %vm44, %v730, 0.0
    %767 = vadd.xlane.f32.xlu0 %v766
    %v768 = vpop.xlane.xlu0 %767
    %v769 = vsel %vm44, %v731, 0.0
    %770 = vadd.xlane.f32.xlu0 %v769
    %v771 = vpop.xlane.xlu0 %770
    %v772 = vsel %vm44, %v732, 0.0
    %773 = vadd.xlane.f32.xlu0 %v772
    %v774 = vpop.xlane.xlu0 %773
    %v775 = vsel %vm44, %v733, 0.0
    %776 = vadd.xlane.f32.xlu0 %v775
    %v777 = vpop.xlane.xlu0 %776
    %v778 = vsel %vm44, %v734, 0.0
    %779 = vadd.xlane.f32.xlu0 %v778
    %v780 = vpop.xlane.xlu0 %779
    %v781 = vsel %vm44, %v735, 0.0
    %782 = vadd.xlane.f32.xlu0 %v781
    %v783 = vpop.xlane.xlu0 %782
    %v784 = vmul.f32 %v738, %v738
    %v785 = vmul.f32 %v741, %v741
    %v786 = vmul.f32 %v744, %v744
    %v787 = vmul.f32 %v747, %v747
    %v788 = vmul.f32 %v750, %v750
    %v789 = vmul.f32 %v753, %v753
    %v790 = vmul.f32 %v756, %v756
    %v791 = vmul.f32 %v759, %v759
    %v792 = vmul.f32 %v762, %v762
    %v793 = vmul.f32 %v765, %v765
    %v794 = vmul.f32 %v768, %v768
    %v795 = vmul.f32 %v771, %v771
    %v796 = vmul.f32 %v774, %v774
    %v797 = vmul.f32 %v777, %v777
    %v798 = vmul.f32 %v780, %v780
    %v799 = vmul.f32 %v783, %v783
    %v800 = vadd.f32 %v784, %v785
    %v801 = vadd.f32 %v800, %v786
    %v802 = vadd.f32 %v801, %v787
    %v803 = vadd.f32 %v802, %v788
    %v804 = vadd.f32 %v803, %v789
    %v805 = vadd.f32 %v804, %v790
    %v806 = vadd.f32 %v805, %v791
    %v807 = vrot.slane %v806, 4
    %v808 = vadd.f32 %v806, %v807
    %v809 = vrot.slane %v808, 2
    %v810 = vadd.f32 %v808, %v809
    %v811 = vrot.slane %v810, 1
    %v812 = vadd.f32 %v810, %v811
    %v813 = vadd.f32 %v792, %v793
    %v814 = vadd.f32 %v813, %v794
    %v815 = vadd.f32 %v814, %v795
    %v816 = vadd.f32 %v815, %v796
    %v817 = vadd.f32 %v816, %v797
    %v818 = vadd.f32 %v817, %v798
    %v819 = vadd.f32 %v818, %v799
    %v820 = vrot.slane %v819, 4
    %v821 = vadd.f32 %v819, %v820
    %v822 = vrot.slane %v821, 2
    %v823 = vadd.f32 %v821, %v822
    %v824 = vrot.slane %v823, 1
    %v825 = vadd.f32 %v823, %v824
    %v826 = vmax.f32 %v812, 1e-24
    %v827 = vmax.f32 %v825, 1e-24
    %v828 = vrsqrt.pop %v826
    %v829 = vmul.f32 %v828, %v826
    %v830 = vmul.f32 %v829, %v828
    %v831 = vmul.f32 0.5, %v830
    %v832 = vsub.f32 1.5, %v831
    %v833 = vmul.f32 %v828, %v832
    %vm834 = vweird.f32 %v826
    %vm835 = vweird.f32 %v828
    %vm836 = vmor %vm834, %vm835
    %v837 = vsel %vm836, %v828, %v833
    %v838 = vrsqrt.pop %v827
    %v839 = vmul.f32 %v838, %v827
    %v840 = vmul.f32 %v839, %v838
    %v841 = vmul.f32 0.5, %v840
    %v842 = vsub.f32 1.5, %v841
    %v843 = vmul.f32 %v838, %v842
    %vm844 = vweird.f32 %v827
    %vm845 = vweird.f32 %v838
    %vm846 = vmor %vm844, %vm845
    %v847 = vsel %vm846, %v838, %v843
    %v848 = vmul.f32 %v738, %v837
    %v849 = vmul.f32 %v741, %v837
    %v850 = vmul.f32 %v744, %v837
    %v851 = vmul.f32 %v747, %v837
    %v852 = vmul.f32 %v750, %v837
    %v853 = vmul.f32 %v753, %v837
    %v854 = vmul.f32 %v756, %v837
    %v855 = vmul.f32 %v759, %v837
    %v856 = vmul.f32 %v762, %v847
    %v857 = vmul.f32 %v765, %v847
    %v858 = vmul.f32 %v768, %v847
    %v859 = vmul.f32 %v771, %v847
    %v860 = vmul.f32 %v774, %v847
    %v861 = vmul.f32 %v777, %v847
    %v862 = vmul.f32 %v780, %v847
    %v863 = vmul.f32 %v783, %v847
    %v864 = vmul.f32 %v848, %v398
    %v865 = vmul.f32 %v849, %v399
    %v866 = vmul.f32 %v850, %v400
    %v867 = vmul.f32 %v851, %v401
    %v868 = vmul.f32 %v852, %v402
    %v869 = vmul.f32 %v853, %v403
    %v870 = vmul.f32 %v854, %v404
    %v871 = vmul.f32 %v855, %v405
    %v872 = vmul.f32 %v856, %v406
    %v873 = vmul.f32 %v857, %v407
    %v874 = vmul.f32 %v858, %v408
    %v875 = vmul.f32 %v859, %v409
    %v876 = vmul.f32 %v860, %v410
    %v877 = vmul.f32 %v861, %v411
    %v878 = vmul.f32 %v862, %v412
    %v879 = vmul.f32 %v863, %v413
    %v880 = vsel %vm44, %v864, 0.0
    %v881 = vsel %vm44, %v865, 0.0
    %v882 = vadd.f32 %v880, %v881
    %v883 = vsel %vm44, %v866, 0.0
    %v884 = vadd.f32 %v882, %v883
    %v885 = vsel %vm44, %v867, 0.0
    %v886 = vadd.f32 %v884, %v885
    %v887 = vsel %vm44, %v868, 0.0
    %v888 = vadd.f32 %v886, %v887
    %v889 = vsel %vm44, %v869, 0.0
    %v890 = vadd.f32 %v888, %v889
    %v891 = vsel %vm44, %v870, 0.0
    %v892 = vadd.f32 %v890, %v891
    %v893 = vsel %vm44, %v871, 0.0
    %v894 = vadd.f32 %v892, %v893
    %v895 = vrot.slane %v894, 4
    %v896 = vadd.f32 %v894, %v895
    %v897 = vrot.slane %v896, 2
    %v898 = vadd.f32 %v896, %v897
    %v899 = vrot.slane %v898, 1
    %v900 = vadd.f32 %v898, %v899
    %v901 = vsel %vm44, %v872, 0.0
    %v902 = vsel %vm44, %v873, 0.0
    %v903 = vadd.f32 %v901, %v902
    %v904 = vsel %vm44, %v874, 0.0
    %v905 = vadd.f32 %v903, %v904
    %v906 = vsel %vm44, %v875, 0.0
    %v907 = vadd.f32 %v905, %v906
    %v908 = vsel %vm44, %v876, 0.0
    %v909 = vadd.f32 %v907, %v908
    %v910 = vsel %vm44, %v877, 0.0
    %v911 = vadd.f32 %v909, %v910
    %v912 = vsel %vm44, %v878, 0.0
    %v913 = vadd.f32 %v911, %v912
    %v914 = vsel %vm44, %v879, 0.0
    %v915 = vadd.f32 %v913, %v914
    %v916 = vrot.slane %v915, 4
    %v917 = vadd.f32 %v915, %v916
    %v918 = vrot.slane %v917, 2
    %v919 = vadd.f32 %v917, %v918
    %v920 = vrot.slane %v919, 1
    %v921 = vadd.f32 %v919, %v920
    %938 = vrot.lane.b32.xlu0 %v702, 64
    %v939 = vpop.permute.xlu0 %938
    %940 = vrot.lane.b32.xlu0 %v703, 64
    %v941 = vpop.permute.xlu0 %940
    %942 = vrot.lane.b32.xlu0 %v704, 64
    %v943 = vpop.permute.xlu0 %942
    %944 = vrot.lane.b32.xlu0 %v705, 64
    %v945 = vpop.permute.xlu0 %944
    %946 = vrot.lane.b32.xlu0 %v706, 64
    %v947 = vpop.permute.xlu0 %946
    %948 = vrot.lane.b32.xlu0 %v707, 64
    %v949 = vpop.permute.xlu0 %948
    %950 = vrot.lane.b32.xlu0 %v708, 64
    %v951 = vpop.permute.xlu0 %950
    %952 = vrot.lane.b32.xlu0 %v709, 64
    %v953 = vpop.permute.xlu0 %952
    %954 = vrot.lane.b32.xlu0 %v710, 64
    %v955 = vpop.permute.xlu0 %954
    %956 = vrot.lane.b32.xlu0 %v711, 64
    %v957 = vpop.permute.xlu0 %956
    %958 = vrot.lane.b32.xlu0 %v712, 64
    %v959 = vpop.permute.xlu0 %958
    %960 = vrot.lane.b32.xlu0 %v713, 64
    %v961 = vpop.permute.xlu0 %960
    %962 = vrot.lane.b32.xlu0 %v714, 64
    %v963 = vpop.permute.xlu0 %962
    %964 = vrot.lane.b32.xlu0 %v715, 64
    %v965 = vpop.permute.xlu0 %964
    %966 = vrot.lane.b32.xlu0 %v716, 64
    %v967 = vpop.permute.xlu0 %966
    %968 = vrot.lane.b32.xlu0 %v717, 64
    %v969 = vpop.permute.xlu0 %968
    %v986 = vmul.f32 %v900, %v939
    %v987 = vmul.f32 %v900, %v941
    %v988 = vmul.f32 %v900, %v943
    %v989 = vmul.f32 %v900, %v945
    %v990 = vmul.f32 %v900, %v947
    %v991 = vmul.f32 %v900, %v949
    %v992 = vmul.f32 %v900, %v951
    %v993 = vmul.f32 %v900, %v953
    %v994 = vmul.f32 %v921, %v955
    %v995 = vmul.f32 %v921, %v957
    %v996 = vmul.f32 %v921, %v959
    %v997 = vmul.f32 %v921, %v961
    %v998 = vmul.f32 %v921, %v963
    %v999 = vmul.f32 %v921, %v965
    %v1000 = vmul.f32 %v921, %v967
    %v1001 = vmul.f32 %v921, %v969
    %v1002 = vld [vmem:[%s3] sm:$0xff]
    %v1003 = vld [vmem:[%s3 + $0x8] sm:$0xff]
    %v1004 = vld [vmem:[%s3 + $0x10] sm:$0xff]
    %v1005 = vld [vmem:[%s3 + $0x18] sm:$0xff]
    %v1006 = vld [vmem:[%s3 + $0x20] sm:$0xff]
    %v1007 = vld [vmem:[%s3 + $0x28] sm:$0xff]
    %v1008 = vld [vmem:[%s3 + $0x30] sm:$0xff]
    %v1009 = vld [vmem:[%s3 + $0x38] sm:$0xff]
    %s1010 = scalar_lea.vmem %s3, 64
    %v1011 = vld [vmem:[%s1010] sm:$0xff]
    %v1012 = vld [vmem:[%s1010 + $0x8] sm:$0xff]
    %v1013 = vld [vmem:[%s1010 + $0x10] sm:$0xff]
    %v1014 = vld [vmem:[%s1010 + $0x18] sm:$0xff]
    %v1015 = vld [vmem:[%s1010 + $0x20] sm:$0xff]
    %v1016 = vld [vmem:[%s1010 + $0x28] sm:$0xff]
    %v1017 = vld [vmem:[%s1010 + $0x30] sm:$0xff]
    %v1018 = vld [vmem:[%s1010 + $0x38] sm:$0xff]
    %v1019 = vld [vmem:[%s2 + $0x2] sm:$0x1]
    %v1021 = vsel %vm44, %v398, 0
    %v1024 = vsel %vm44, %v399, 0
    %v1027 = vsel %vm44, %v400, 0
    %v1030 = vsel %vm44, %v401, 0
    %v1033 = vsel %vm44, %v402, 0
    %v1036 = vsel %vm44, %v403, 0
    %v1039 = vsel %vm44, %v404, 0
    %v1042 = vsel %vm44, %v405, 0
    %v1045 = vsel %vm44, %v406, 0
    %v1048 = vsel %vm44, %v407, 0
    %v1051 = vsel %vm44, %v408, 0
    %v1054 = vsel %vm44, %v409, 0
    %v1057 = vsel %vm44, %v410, 0
    %v1060 = vsel %vm44, %v411, 0
    %v1063 = vsel %vm44, %v412, 0
    %v1066 = vsel %vm44, %v413, 0
    %1068 = vmatpush.msra.mxu0 0.0
    %1069 = vmatpush.msra.mxu0 0.0
    %1070 = vmatpush.msra.mxu0 0.0
    %1071 = vmatpush.msra.mxu0 0.0
    %1072 = vmatpush.msra.mxu0 0.0
    %1073 = vmatpush.msra.mxu0 0.0
    %1074 = vmatpush.msra.mxu0 0.0
    %1075 = vmatpush.msra.mxu0 0.0
    %1076 = vmatpush.msra.mxu0 %v1018
    %1077 = vmatpush.msra.mxu0 %v1017
    %1078 = vmatpush.msra.mxu0 %v1016
    %1079 = vmatpush.msra.mxu0 %v1015
    %1080 = vmatpush.msra.mxu0 %v1014
    %1081 = vmatpush.msra.mxu0 %v1013
    %1082 = vmatpush.msra.mxu0 %v1012
    %1083 = vmatpush.msra.mxu0 %v1011
    %1084 = vmatmul.f32.gmra.mxu0 %v1021
    %v1085 = vpop.f32.mrf.mxu0
    %v1086 = vadd.f32 0.0, %v1085
    %1087 = vmatmul.f32.gmra.mxu0 %v1024
    %v1088 = vpop.f32.mrf.mxu0
    %v1089 = vadd.f32 0.0, %v1088
    %1090 = vmatmul.f32.gmra.mxu0 %v1027
    %v1091 = vpop.f32.mrf.mxu0
    %v1092 = vadd.f32 0.0, %v1091
    %1093 = vmatmul.f32.gmra.mxu0 %v1030
    %v1094 = vpop.f32.mrf.mxu0
    %v1095 = vadd.f32 0.0, %v1094
    %1096 = vmatmul.f32.gmra.mxu0 %v1033
    %v1097 = vpop.f32.mrf.mxu0
    %v1098 = vadd.f32 0.0, %v1097
    %1099 = vmatmul.f32.gmra.mxu0 %v1036
    %v1100 = vpop.f32.mrf.mxu0
    %v1101 = vadd.f32 0.0, %v1100
    %1102 = vmatmul.f32.gmra.mxu0 %v1039
    %v1103 = vpop.f32.mrf.mxu0
    %v1104 = vadd.f32 0.0, %v1103
    %1105 = vmatmul.f32.gmra.mxu0 %v1042
    %v1106 = vpop.f32.mrf.mxu0
    %v1107 = vadd.f32 0.0, %v1106
    %1108 = vmatmul.f32.gmra.mxu0 %v1045
    %v1109 = vpop.f32.mrf.mxu0
    %v1110 = vadd.f32 0.0, %v1109
    %1111 = vmatmul.f32.gmra.mxu0 %v1048
    %v1112 = vpop.f32.mrf.mxu0
    %v1113 = vadd.f32 0.0, %v1112
    %1114 = vmatmul.f32.gmra.mxu0 %v1051
    %v1115 = vpop.f32.mrf.mxu0
    %v1116 = vadd.f32 0.0, %v1115
    %1117 = vmatmul.f32.gmra.mxu0 %v1054
    %v1118 = vpop.f32.mrf.mxu0
    %v1119 = vadd.f32 0.0, %v1118
    %1120 = vmatmul.f32.gmra.mxu0 %v1057
    %v1121 = vpop.f32.mrf.mxu0
    %v1122 = vadd.f32 0.0, %v1121
    %1123 = vmatmul.f32.gmra.mxu0 %v1060
    %v1124 = vpop.f32.mrf.mxu0
    %v1125 = vadd.f32 0.0, %v1124
    %1126 = vmatmul.f32.gmra.mxu0 %v1063
    %v1127 = vpop.f32.mrf.mxu0
    %v1128 = vadd.f32 0.0, %v1127
    %1129 = vmatmul.f32.gmra.mxu0 %v1066
    %v1130 = vpop.f32.mrf.mxu0
    %v1131 = vadd.f32 0.0, %v1130
    %1132 = vdwg.mxu0
    %v1134 = vsel %vm44, %v986, 0
    %v1137 = vsel %vm44, %v987, 0
    %v1140 = vsel %vm44, %v988, 0
    %v1143 = vsel %vm44, %v989, 0
    %v1146 = vsel %vm44, %v990, 0
    %v1149 = vsel %vm44, %v991, 0
    %v1152 = vsel %vm44, %v992, 0
    %v1155 = vsel %vm44, %v993, 0
    %v1158 = vsel %vm44, %v994, 0
    %v1161 = vsel %vm44, %v995, 0
    %v1164 = vsel %vm44, %v996, 0
    %v1167 = vsel %vm44, %v997, 0
    %v1170 = vsel %vm44, %v998, 0
    %v1173 = vsel %vm44, %v999, 0
    %v1176 = vsel %vm44, %v1000, 0
    %v1179 = vsel %vm44, %v1001, 0
    %1181 = vmatpush.msra.mxu0 0.0
    %1182 = vmatpush.msra.mxu0 0.0
    %1183 = vmatpush.msra.mxu0 0.0
    %1184 = vmatpush.msra.mxu0 0.0
    %1185 = vmatpush.msra.mxu0 0.0
    %1186 = vmatpush.msra.mxu0 0.0
    %1187 = vmatpush.msra.mxu0 0.0
    %1188 = vmatpush.msra.mxu0 0.0
    %1189 = vmatpush.msra.mxu0 %v1009
    %1190 = vmatpush.msra.mxu0 %v1008
    %1191 = vmatpush.msra.mxu0 %v1007
    %1192 = vmatpush.msra.mxu0 %v1006
    %1193 = vmatpush.msra.mxu0 %v1005
    %1194 = vmatpush.msra.mxu0 %v1004
    %1195 = vmatpush.msra.mxu0 %v1003
    %1196 = vmatpush.msra.mxu0 %v1002
    %1197 = vmatmul.f32.gmra.mxu0 %v1134
    %v1198 = vpop.f32.mrf.mxu0
    %v1199 = vadd.f32 %v1086, %v1198
    %1200 = vmatmul.f32.gmra.mxu0 %v1137
    %v1201 = vpop.f32.mrf.mxu0
    %v1202 = vadd.f32 %v1089, %v1201
    %1203 = vmatmul.f32.gmra.mxu0 %v1140
    %v1204 = vpop.f32.mrf.mxu0
    %v1205 = vadd.f32 %v1092, %v1204
    %1206 = vmatmul.f32.gmra.mxu0 %v1143
    %v1207 = vpop.f32.mrf.mxu0
    %v1208 = vadd.f32 %v1095, %v1207
    %1209 = vmatmul.f32.gmra.mxu0 %v1146
    %v1210 = vpop.f32.mrf.mxu0
    %v1211 = vadd.f32 %v1098, %v1210
    %1212 = vmatmul.f32.gmra.mxu0 %v1149
    %v1213 = vpop.f32.mrf.mxu0
    %v1214 = vadd.f32 %v1101, %v1213
    %1215 = vmatmul.f32.gmra.mxu0 %v1152
    %v1216 = vpop.f32.mrf.mxu0
    %v1217 = vadd.f32 %v1104, %v1216
    %1218 = vmatmul.f32.gmra.mxu0 %v1155
    %v1219 = vpop.f32.mrf.mxu0
    %v1220 = vadd.f32 %v1107, %v1219
    %1221 = vmatmul.f32.gmra.mxu0 %v1158
    %v1222 = vpop.f32.mrf.mxu0
    %v1223 = vadd.f32 %v1110, %v1222
    %1224 = vmatmul.f32.gmra.mxu0 %v1161
    %v1225 = vpop.f32.mrf.mxu0
    %v1226 = vadd.f32 %v1113, %v1225
    %1227 = vmatmul.f32.gmra.mxu0 %v1164
    %v1228 = vpop.f32.mrf.mxu0
    %v1229 = vadd.f32 %v1116, %v1228
    %1230 = vmatmul.f32.gmra.mxu0 %v1167
    %v1231 = vpop.f32.mrf.mxu0
    %v1232 = vadd.f32 %v1119, %v1231
    %1233 = vmatmul.f32.gmra.mxu0 %v1170
    %v1234 = vpop.f32.mrf.mxu0
    %v1235 = vadd.f32 %v1122, %v1234
    %1236 = vmatmul.f32.gmra.mxu0 %v1173
    %v1237 = vpop.f32.mrf.mxu0
    %v1238 = vadd.f32 %v1125, %v1237
    %1239 = vmatmul.f32.gmra.mxu0 %v1176
    %v1240 = vpop.f32.mrf.mxu0
    %v1241 = vadd.f32 %v1128, %v1240
    %1242 = vmatmul.f32.gmra.mxu0 %v1179
    %v1243 = vpop.f32.mrf.mxu0
    %v1244 = vadd.f32 %v1131, %v1243
    %1245 = vdwg.mxu0
    %v1246 = vperm.slane %v1019, 0
    %v1247 = vadd.f32 %v1199, %v1246
    %v1248 = vadd.f32 %v1202, %v1246
    %v1249 = vadd.f32 %v1205, %v1246
    %v1250 = vadd.f32 %v1208, %v1246
    %v1251 = vadd.f32 %v1211, %v1246
    %v1252 = vadd.f32 %v1214, %v1246
    %v1253 = vadd.f32 %v1217, %v1246
    %v1254 = vadd.f32 %v1220, %v1246
    %v1255 = vadd.f32 %v1223, %v1246
    %v1256 = vadd.f32 %v1226, %v1246
    %v1257 = vadd.f32 %v1229, %v1246
    %v1258 = vadd.f32 %v1232, %v1246
    %v1259 = vadd.f32 %v1235, %v1246
    %v1260 = vadd.f32 %v1238, %v1246
    %v1261 = vadd.f32 %v1241, %v1246
    %v1262 = vadd.f32 %v1244, %v1246
    %1263 = vst.msk [vmem:[#allocation2] sm:$0xff] %vm44, %v1247
    %1264 = vst.msk [vmem:[#allocation2 + $0x8] sm:$0xff] %vm44, %v1248
    %1265 = vst.msk [vmem:[#allocation2 + $0x10] sm:$0xff] %vm44, %v1249
    %1266 = vst.msk [vmem:[#allocation2 + $0x18] sm:$0xff] %vm44, %v1250
    %1267 = vst.msk [vmem:[#allocation2 + $0x20] sm:$0xff] %vm44, %v1251
    %1268 = vst.msk [vmem:[#allocation2 + $0x28] sm:$0xff] %vm44, %v1252
    %1269 = vst.msk [vmem:[#allocation2 + $0x30] sm:$0xff] %vm44, %v1253
    %1270 = vst.msk [vmem:[#allocation2 + $0x38] sm:$0xff] %vm44, %v1254
    %1271 = vst.msk [vmem:[#allocation2 + $0x40] sm:$0xff] %vm44, %v1255
    %1272 = vst.msk [vmem:[#allocation2 + $0x48] sm:$0xff] %vm44, %v1256
    %1273 = vst.msk [vmem:[#allocation2 + $0x50] sm:$0xff] %vm44, %v1257
    %1274 = vst.msk [vmem:[#allocation2 + $0x58] sm:$0xff] %vm44, %v1258
    %1275 = vst.msk [vmem:[#allocation2 + $0x60] sm:$0xff] %vm44, %v1259
    %1276 = vst.msk [vmem:[#allocation2 + $0x68] sm:$0xff] %vm44, %v1260
    %1277 = vst.msk [vmem:[#allocation2 + $0x70] sm:$0xff] %vm44, %v1261
    %1278 = vst.msk [vmem:[#allocation2 + $0x78] sm:$0xff] %vm44, %v1262
    // Predicated region
    $region18: #{efficient_additive_attention.1} parent=1 // pred_check
      _
    $region19: #{efficient_additive_attention.1} parent=1 // pred_check_branch
      %1280 = sbr.rel (0) target = $region21
    $region20: #{efficient_additive_attention.1} parent=1 // pred_region
      %1282 = vsyncadd [#allocation3], 0
      %s1283 = sshll.u32 [#allocation2], 4
      %s1284 = int_to_ptr.vmem [resolvable:$true] %s1283
      %s1285 = sshll.u32 %s4, 4
      %s1286 = int_to_ptr.hbm [resolvable:$true] %s1285
      %1291 = dma.vmem_to_hbm [thread:$0]  %s1284, 2048, %s1286, [#allocation3], 128, 128, 8
    $region21: #{efficient_additive_attention.1} parent=1 // pred_fallthru
      _
    // Predicated region
    $region22: #{efficient_additive_attention.1} parent=1 // pred_check
      _
    $region23: #{efficient_additive_attention.1} parent=1 // pred_check_branch
      %1293 = sbr.rel (0) target = $region25
    $region24: #{efficient_additive_attention.1} parent=1 // pred_region
      %1295 = dma.done [#allocation3], 2048
    $region25: #{efficient_additive_attention.1} parent=1 // pred_fallthru
      _
    %1296 = vsyncpa [#allocation3], 1

</llo_original>
